<compile_context>
chip_gen: v7x
topology: tpu7x:2x2x1
jax: 0.10.0
libtpu: 0.0.40
codegen_flags: <defaults>
</compile_context>

<pallas_src>
import jax
import jax.numpy as jnp
from jax import lax
from jax.experimental import pallas as pl
from jax.experimental.pallas import tpu as pltpu

BN_EPS = 1e-5
NEG_SLOPE = 0.01                       # nn.LeakyReLU default negative_slope
_VMEM_LIMIT = 32 * 1024 * 1024         # scoped-VMEM request; safe on v5e/v6e/v7x


def _round_up(x, m):
    return (x + m - 1) // m * m


# ---------------------------------------------------------------------------
# Phase 1: row-tiled conv matmul + per-tile BN partial statistics
# ---------------------------------------------------------------------------
def _conv_stats_kernel(p_ref, w_ref, conv_ref, psum_ref, psumsq_ref):
    # p_ref:    (tile_r, K_pad)  bf16 im2col rows of this tile
    # w_ref:    (K_pad, Cout)    bf16 reshaped conv weight
    # conv_ref: (tile_r, Cout)   bf16 raw conv output (pre-BN)
    # psum/psumsq: (1, 1, Cout)  f32 per-tile partial sum / sum-of-squares
    acc = jnp.dot(p_ref[...], w_ref[...], preferred_element_type=jnp.float32)
    conv_ref[...] = acc.astype(conv_ref.dtype)
    s = jnp.sum(acc, axis=0, keepdims=True)            # (1, Cout)
    ss = jnp.sum(acc * acc, axis=0, keepdims=True)     # (1, Cout)
    psum_ref[...] = s[None]
    psumsq_ref[...] = ss[None]


# ---------------------------------------------------------------------------
# Phase 2: fused BN-apply + LeakyReLU + MaxPool2d(3, stride=2, padding=1)
# ---------------------------------------------------------------------------
def _bn_lrelu_pool_kernel(x_ref, scale_ref, shift_ref, o_ref, ypad_ref):
    # x_ref:    (1, Ho, Wo, C) bf16 raw conv activation of one image (NHWC)
    # scale/shift: (1, C) f32 folded BN affine: gamma*rsqrt(var+eps), beta-mean*scale
    # o_ref:    (1, Hp, Wp, C) f32 pooled output
    # ypad_ref: (2*Hp+2, 2*Wp+2, C) f32 scratch holding the -inf-padded activation
    _, Ho, Wo, C = x_ref.shape
    _, Hp, Wp, _ = o_ref.shape
    neg = jnp.finfo(jnp.float32).min

    # Borders stay at -inf (maxpool's implicit padding).  Re-initialized every
    # grid step so the kernel is safe if the "parallel" axis is core-sharded.
    ypad_ref[...] = jnp.full(ypad_ref.shape, neg, dtype=jnp.float32)

    scale = scale_ref[...].reshape(1, 1, C)
    shift = shift_ref[...].reshape(1, 1, C)
    y = x_ref[0].astype(jnp.float32) * scale + shift
    y = jnp.where(y >= 0, y, NEG_SLOPE * y)            # LeakyReLU
    ypad_ref[1:Ho + 1, 1:Wo + 1, :] = y

    # Separable max pool.  W direction: three stride-2 slabs (strided ref loads
    # on the sublane axis), reduced with full-tile VPU maxima.
    w0 = ypad_ref[:, pl.ds(0, Wp, stride=2), :]
    w1 = ypad_ref[:, pl.ds(1, Wp, stride=2), :]
    w2 = ypad_ref[:, pl.ds(2, Wp, stride=2), :]
    wmax = jnp.maximum(jnp.maximum(w0, w1), w2)        # (2*Hp+2, Wp, C)

    # H direction: decimate by splitting the (outer) H axis into (Hp+1, 2) --
    # a layout-free reshape -- and maxing the three contributing rows.
    r = wmax.reshape(Hp + 1, 2, Wp, C)
    hmax = jnp.maximum(jnp.maximum(r[:Hp, 0], r[:Hp, 1]), r[1:Hp + 1, 0])
    o_ref[...] = hmax[None].astype(o_ref.dtype)


# ---------------------------------------------------------------------------
# Wrapper (glue: bf16 im2col, BN-stat finalize, layout transposes)
# ---------------------------------------------------------------------------
def standard_stem_forward(x_nchw, weight, gamma, beta, *, tile_r_target=4096):
    """x_nchw: (N,Cin,H,W) f32; weight: (Cout,Cin,7,7); gamma/beta: (Cout,).
    Returns (N, Cout, H//4, W//4) f32 in NCHW, matching the PyTorch module."""
    N, Cin, H, W = x_nchw.shape
    Cout, _, KH, KW = weight.shape
    stride, pad = 2, 3
    Ho = (H + 2 * pad - KH) // stride + 1
    Wo = (W + 2 * pad - KW) // stride + 1
    Hp = (Ho - 1) // 2 + 1             # MaxPool2d(3, stride=2, padding=1)
    Wp = (Wo - 1) // 2 + 1

    R = N * Ho * Wo
    K = Cin * KH * KW
    K_pad = _round_up(K, 128)          # lane-pad K -> no masked edge loads
    tile_r = min(tile_r_target, _round_up(R, 8))
    R_pad = _round_up(R, tile_r)
    num_tiles = R_pad // tile_r

    # --- im2col in bf16 (XLA glue).  Row order (n,oh,ow); col order (kh,kw,cin).
    # TODO(synk): a fully in-kernel halo gather would remove this materialization;
    # bf16 + row tiling already halves the dominant patch HBM traffic.
    x_nhwc = jnp.transpose(x_nchw, (0, 2, 3, 1)).astype(jnp.bfloat16)
    xp = jnp.pad(x_nhwc, ((0, 0), (pad, pad), (pad, pad), (0, 0)))
    taps = []
    for kh in range(KH):
        for kw in range(KW):
            taps.append(
                xp[:, kh:kh + stride * Ho:stride, kw:kw + stride * Wo:stride, :])
    patches = jnp.concatenate(taps, axis=-1).reshape(R, K)
    patches = jnp.pad(patches, ((0, R_pad - R), (0, K_pad - K)))
    w2d = jnp.transpose(weight, (2, 3, 1, 0)).reshape(K, Cout).astype(jnp.bfloat16)
    w2d = jnp.pad(w2d, ((0, K_pad - K), (0, 0)))

    conv_raw, psum, psumsq = pl.pallas_call(
        _conv_stats_kernel,
        out_shape=(
            jax.ShapeDtypeStruct((R_pad, Cout), jnp.bfloat16),
            jax.ShapeDtypeStruct((num_tiles, 1, Cout), jnp.float32),
            jax.ShapeDtypeStruct((num_tiles, 1, Cout), jnp.float32),
        ),
        grid=(num_tiles,),
        in_specs=[
            pl.BlockSpec((tile_r, K_pad), lambda i: (i, 0)),
            pl.BlockSpec((K_pad, Cout), lambda i: (0, 0)),
        ],
        out_specs=(
            pl.BlockSpec((tile_r, Cout), lambda i: (i, 0)),
            pl.BlockSpec((1, 1, Cout), lambda i: (i, 0, 0)),
            pl.BlockSpec((1, 1, Cout), lambda i: (i, 0, 0)),
        ),
        compiler_params=pltpu.CompilerParams(
            dimension_semantics=("parallel",),
            vmem_limit_bytes=_VMEM_LIMIT,
        ),
    )(patches, w2d)

    # --- finalize BatchNorm batch statistics (training mode, biased variance).
    # Zero-padded rows contribute exactly zero to both partials; divide by the
    # real row count R.
    total = jnp.sum(psum[:, 0, :], axis=0)
    total_sq = jnp.sum(psumsq[:, 0, :], axis=0)
    mean = total / R
    var = jnp.maximum(total_sq / R - mean * mean, 0.0)
    inv_std = lax.rsqrt(var + BN_EPS)
    scale = (gamma * inv_std).astype(jnp.float32).reshape(1, Cout)
    shift = (beta - mean * gamma * inv_std).astype(jnp.float32).reshape(1, Cout)

    feat = conv_raw[:R].reshape(N, Ho, Wo, Cout)       # NHWC, bf16

    pooled = pl.pallas_call(
        _bn_lrelu_pool_kernel,
        out_shape=jax.ShapeDtypeStruct((N, Hp, Wp, Cout), jnp.float32),
        grid=(N,),
        in_specs=[
            pl.BlockSpec((1, Ho, Wo, Cout), lambda n: (n, 0, 0, 0)),
            pl.BlockSpec((1, Cout), lambda n: (0, 0)),
            pl.BlockSpec((1, Cout), lambda n: (0, 0)),
        ],
        out_specs=pl.BlockSpec((1, Hp, Wp, Cout), lambda n: (n, 0, 0, 0)),
        scratch_shapes=[pltpu.VMEM((2 * Hp + 2, 2 * Wp + 2, Cout), jnp.float32)],
        compiler_params=pltpu.CompilerParams(
            dimension_semantics=("parallel",),
            vmem_limit_bytes=_VMEM_LIMIT,
        ),
    )(feat, scale, shift)

    # TODO(synk): use_dropout defaults to False -> Dropout2d is the identity here.
    return pooled.transpose(0, 3, 1, 2)                # back to NCHW


# ---------------------------------------------------------------------------
# Pure-JAX reference (for correctness check only)
# ---------------------------------------------------------------------------
def _reference(x, weight, gamma, beta):
    conv = lax.conv_general_dilated(
        x, weight, window_strides=(2, 2), padding=((3, 3), (3, 3)),
        dimension_numbers=("NCHW", "OIHW", "NCHW"))
    mean = conv.mean(axis=(0, 2, 3), keepdims=True)
    var = conv.var(axis=(0, 2, 3), keepdims=True)
    y = (conv - mean) / jnp.sqrt(var + BN_EPS)
    y = y * gamma.reshape(1, -1, 1, 1) + beta.reshape(1, -1, 1, 1)
    y = jnp.where(y >= 0, y, NEG_SLOPE * y)
    return lax.reduce_window(
        y, -jnp.inf, lax.max,
        window_dimensions=(1, 1, 3, 3), window_strides=(1, 1, 2, 2),
        padding=((0, 0), (0, 0), (1, 1), (1, 1)))


if __name__ == "__main__":
    key = jax.random.PRNGKey(0)
    k_x, k_w, k_g, k_b = jax.random.split(key, 4)

    N, Cin, H, W = 2, 3, 16, 16
    Cout = 64

    x = jax.random.normal(k_x, (N, Cin, H, W), dtype=jnp.float32)
    weight = jax.random.normal(k_w, (Cout, Cin, 7, 7), dtype=jnp.float32) * 0.1
    gamma = 1.0 + 0.1 * jax.random.normal(k_g, (Cout,), dtype=jnp.float32)
    beta = 0.1 * jax.random.normal(k_b, (Cout,), dtype=jnp.float32)

    out = jax.block_until_ready(standard_stem_forward(x, weight, gamma, beta))

    ref = _reference(x, weight, gamma, beta)
    assert out.shape == (N, Cout, H // 4, W // 4), out.shape
    max_err = float(jnp.max(jnp.abs(out - ref)))
    # bf16 patches + bf16 conv intermediate -> slightly relaxed tolerance vs f32 ref
    assert jnp.allclose(out, ref, atol=3e-2, rtol=3e-2), max_err

    print("KERNEL_OK")
</pallas_src>

<mosaic_0001>
module attributes {stable_mosaic.version = 11 : i64} {
  func.func @_conv_stats_kernel(%arg0: i32, %arg1: memref<128x256xbf16, #tpu.memory_space<vmem>>, %arg2: memref<256x64xbf16, #tpu.memory_space<vmem>>, %arg3: memref<128x64xbf16, #tpu.memory_space<vmem>>, %arg4: memref<1x1x64xf32, #tpu.memory_space<vmem>>, %arg5: memref<1x1x64xf32, #tpu.memory_space<vmem>>) attributes {dimension_semantics = [#tpu.dimension_semantics<parallel>], iteration_bounds = array<i64: 1>, scalar_prefetch = 0 : i64, scratch_operands = 0 : i64, tpu.core_type = #tpu.core_type<tc>, window_params = [{transform_indices = @transform_0, window_bounds = array<i64: 128, 256>}, {pipeline_mode = #tpu.pipeline_mode<synchronous>, transform_indices = @transform_1, window_bounds = array<i64: 256, 64>}, {transform_indices = @transform_2, window_bounds = array<i64: 128, 64>}, {transform_indices = @transform_3, window_bounds = array<i64: 1, 1, 64>}, {transform_indices = @transform_4, window_bounds = array<i64: 1, 1, 64>}]} {
    %c0 = arith.constant 0 : index
    %c0_0 = arith.constant 0 : index
    %0 = vector.load %arg1[%c0, %c0_0] : memref<128x256xbf16, #tpu.memory_space<vmem>>, vector<128x256xbf16>
    %c0_1 = arith.constant 0 : index
    %c0_2 = arith.constant 0 : index
    %1 = vector.load %arg2[%c0_1, %c0_2] : memref<256x64xbf16, #tpu.memory_space<vmem>>, vector<256x64xbf16>
    %cst = arith.constant dense<0.000000e+00> : vector<128x64xf32>
    %2 = tpu.matmul %0, %1, %cst {dimension_numbers = #tpu.dot_dimension_numbers<[1], [0], [0], [1], [0, 0, 1, 1], [], []>} : vector<128x256xbf16>, vector<256x64xbf16>, vector<128x64xf32> -> vector<128x64xf32>
    %3 = arith.truncf %2 : vector<128x64xf32> to vector<128x64xbf16>
    %c0_3 = arith.constant 0 : index
    %c0_4 = arith.constant 0 : index
    %4 = vector.load %arg3[%c0_3, %c0_4] : memref<128x64xbf16, #tpu.memory_space<vmem>>, vector<128x64xbf16>
    tpu.vector_store %arg3[%c0_3, %c0_4], %3 {strides = array<i32>} : memref<128x64xbf16, #tpu.memory_space<vmem>>, vector<128x64xbf16>,
    %cst_5 = arith.constant dense<0.000000e+00> : vector<64xf32>
    %5 = vector.multi_reduction <add>, %2, %cst_5 [0] : vector<128x64xf32> to vector<64xf32>
    %6 = vector.shape_cast %5 : vector<64xf32> to vector<1x64xf32>
    %7 = arith.mulf %2, %2 : vector<128x64xf32>
    %cst_6 = arith.constant dense<0.000000e+00> : vector<64xf32>
    %8 = vector.multi_reduction <add>, %7, %cst_6 [0] : vector<128x64xf32> to vector<64xf32>
    %9 = vector.shape_cast %8 : vector<64xf32> to vector<1x64xf32>
    %10 = vector.shape_cast %6 : vector<1x64xf32> to vector<1x1x64xf32>
    %c0_7 = arith.constant 0 : index
    %c0_8 = arith.constant 0 : index
    %c0_9 = arith.constant 0 : index
    %11 = vector.load %arg4[%c0_7, %c0_8, %c0_9] : memref<1x1x64xf32, #tpu.memory_space<vmem>>, vector<1x1x64xf32>
    tpu.vector_store %arg4[%c0_7, %c0_8, %c0_9], %10 {strides = array<i32>} : memref<1x1x64xf32, #tpu.memory_space<vmem>>, vector<1x1x64xf32>,
    %12 = vector.shape_cast %9 : vector<1x64xf32> to vector<1x1x64xf32>
    %c0_10 = arith.constant 0 : index
    %c0_11 = arith.constant 0 : index
    %c0_12 = arith.constant 0 : index
    %13 = vector.load %arg5[%c0_10, %c0_11, %c0_12] : memref<1x1x64xf32, #tpu.memory_space<vmem>>, vector<1x1x64xf32>
    tpu.vector_store %arg5[%c0_10, %c0_11, %c0_12], %12 {strides = array<i32>} : memref<1x1x64xf32, #tpu.memory_space<vmem>>, vector<1x1x64xf32>,
    return
  }
  func.func @transform_0(%arg0: i32) -> (i32, i32) {
    %c0_i32 = arith.constant 0 : i32
    %c0_i32_0 = arith.constant 0 : i32
    return %arg0, %c0_i32 : i32, i32
  }
  func.func @transform_1(%arg0: i32) -> (i32, i32) {
    %c0_i32 = arith.constant 0 : i32
    %c0_i32_0 = arith.constant 0 : i32
    %c0_i32_1 = arith.constant 0 : i32
    return %c0_i32, %c0_i32_0 : i32, i32
  }
  func.func @transform_2(%arg0: i32) -> (i32, i32) {
    %c0_i32 = arith.constant 0 : i32
    %c0_i32_0 = arith.constant 0 : i32
    return %arg0, %c0_i32 : i32, i32
  }
  func.func @transform_3(%arg0: i32) -> (i32, i32, i32) {
    %c0_i32 = arith.constant 0 : i32
    %c0_i32_0 = arith.constant 0 : i32
    %c0_i32_1 = arith.constant 0 : i32
    return %arg0, %c0_i32, %c0_i32_0 : i32, i32, i32
  }
  func.func @transform_4(%arg0: i32) -> (i32, i32, i32) {
    %c0_i32 = arith.constant 0 : i32
    %c0_i32_0 = arith.constant 0 : i32
    %c0_i32_1 = arith.constant 0 : i32
    return %arg0, %c0_i32, %c0_i32_0 : i32, i32, i32
  }
}

</mosaic_0001>

<llo_original>
// kernel: tpu_custom_call.1
$region0: #{tpu_custom_call.1}
  #allocation0 [shape = 'u32[]', space=smem, size = 0x4, offset = 0x4, fixed_abs, tag = 'smem constant byte address 0x4 - core index']
  #allocation1 [shape = 'u32[144,128]{1,0:T(1,128)}', space=vmem, size = 0x12000, scoped, tag = 'internal scratch']
  %s0 = inlined_call_operand.vmem [shape: bf16[128,256], index: 0, kind: input, shape index: {}]
  %s1 = inlined_call_operand.vmem [shape: bf16[256,64], index: 1, kind: input, shape index: {}]
  %s2 = inlined_call_operand.vmem [shape: bf16[128,64], index: 2, kind: output, shape index: {0}]
  %s3 = inlined_call_operand.hbm [shape: f32[1,1,64], index: 3, kind: output, shape index: {1}]
  %s4 = inlined_call_operand.hbm [shape: f32[1,1,64], index: 4, kind: output, shape index: {2}]
  %5 = xla_tuple %s2, %s3, %s4
  %s6 = sld [smem:[#allocation0]]
  $region34: #{tpu_custom_call.1} parent=0
    _
  %s8 = ssub.s32 1, %s6
  %s9 = scalar_select 0, %s8, %s6
  $region1: #{tpu_custom_call.1} parent=0
    #allocation2 [shape = 'u8[512]{0}', space=vmem, size = 0x400, scoped, tag = 'output window, operand 1, single buffered']
    #allocation3 [shape = 's32[1]{0}', space=sflag, size = 0x4, scoped, tag = 'scoped memory for tpu_custom_call.1']
    #allocation4 [shape = 'u8[512]{0}', space=vmem, size = 0x400, scoped, tag = 'output window, operand 2, single buffered']
    #allocation5 [shape = 's32[1]{0}', space=sflag, size = 0x4, scoped, tag = 'scoped memory for tpu_custom_call.1']
    %10 = vsyncpa [#allocation3], 0
    %11 = vsyncpa [#allocation5], 0
    // Predicated region
    $region2: #{tpu_custom_call.1} parent=1 // pred_check
      _
    $region3: #{tpu_custom_call.1} parent=1 // pred_check_branch
      %13 = sbr.rel (0) target = $region5
    $region4: #{tpu_custom_call.1} parent=1 // pred_region
      _
    $region5: #{tpu_custom_call.1} parent=1 // pred_fallthru
      _
    // Predicated region
    $region6: #{tpu_custom_call.1} parent=1 // pred_check
      _
    $region7: #{tpu_custom_call.1} parent=1 // pred_check_branch
      %15 = sbr.rel (0) target = $region9
    $region8: #{tpu_custom_call.1} parent=1 // pred_region
      _
    $region9: #{tpu_custom_call.1} parent=1 // pred_fallthru
      _
    %v17 = vld [vmem:[%s0] sm:$0xff]
    %v18 = vld [vmem:[%s0 + $0x8] sm:$0xff]
    %v19 = vld [vmem:[%s0 + $0x10] sm:$0xff]
    %v20 = vld [vmem:[%s0 + $0x18] sm:$0xff]
    %v21 = vld [vmem:[%s0 + $0x20] sm:$0xff]
    %v22 = vld [vmem:[%s0 + $0x28] sm:$0xff]
    %v23 = vld [vmem:[%s0 + $0x30] sm:$0xff]
    %v24 = vld [vmem:[%s0 + $0x38] sm:$0xff]
    %v25 = vld [vmem:[%s0 + $0x40] sm:$0xff]
    %v26 = vld [vmem:[%s0 + $0x48] sm:$0xff]
    %v27 = vld [vmem:[%s0 + $0x50] sm:$0xff]
    %v28 = vld [vmem:[%s0 + $0x58] sm:$0xff]
    %v29 = vld [vmem:[%s0 + $0x60] sm:$0xff]
    %v30 = vld [vmem:[%s0 + $0x68] sm:$0xff]
    %v31 = vld [vmem:[%s0 + $0x70] sm:$0xff]
    %v32 = vld [vmem:[%s0 + $0x78] sm:$0xff]
    %v33 = vld [vmem:[%s1] sm:$0xf]
    %v34 = vld [vmem:[%s1 + $0x4] sm:$0xf]
    %v35 = vld [vmem:[%s1 + $0x8] sm:$0xf]
    %v36 = vld [vmem:[%s1 + $0xc] sm:$0xf]
    %v37 = vld [vmem:[%s1 + $0x10] sm:$0xf]
    %v38 = vld [vmem:[%s1 + $0x14] sm:$0xf]
    %v39 = vld [vmem:[%s1 + $0x18] sm:$0xf]
    %v40 = vld [vmem:[%s1 + $0x1c] sm:$0xf]
    %v41 = vld [vmem:[%s1 + $0x20] sm:$0xf]
    %v42 = vld [vmem:[%s1 + $0x24] sm:$0xf]
    %v43 = vld [vmem:[%s1 + $0x28] sm:$0xf]
    %v44 = vld [vmem:[%s1 + $0x2c] sm:$0xf]
    %v45 = vld [vmem:[%s1 + $0x30] sm:$0xf]
    %v46 = vld [vmem:[%s1 + $0x34] sm:$0xf]
    %v47 = vld [vmem:[%s1 + $0x38] sm:$0xf]
    %v48 = vld [vmem:[%s1 + $0x3c] sm:$0xf]
    %v49 = vld [vmem:[%s1 + $0x40] sm:$0xf]
    %v50 = vld [vmem:[%s1 + $0x44] sm:$0xf]
    %v51 = vld [vmem:[%s1 + $0x48] sm:$0xf]
    %v52 = vld [vmem:[%s1 + $0x4c] sm:$0xf]
    %v53 = vld [vmem:[%s1 + $0x50] sm:$0xf]
    %v54 = vld [vmem:[%s1 + $0x54] sm:$0xf]
    %v55 = vld [vmem:[%s1 + $0x58] sm:$0xf]
    %v56 = vld [vmem:[%s1 + $0x5c] sm:$0xf]
    %v57 = vld [vmem:[%s1 + $0x60] sm:$0xf]
    %v58 = vld [vmem:[%s1 + $0x64] sm:$0xf]
    %v59 = vld [vmem:[%s1 + $0x68] sm:$0xf]
    %v60 = vld [vmem:[%s1 + $0x6c] sm:$0xf]
    %v61 = vld [vmem:[%s1 + $0x70] sm:$0xf]
    %v62 = vld [vmem:[%s1 + $0x74] sm:$0xf]
    %v63 = vld [vmem:[%s1 + $0x78] sm:$0xf]
    %v64 = vld [vmem:[%s1 + $0x7c] sm:$0xf]
    %v81 = vunpack.c.l.b16 %v17
    %v82 = vunpack.c.h.b16 %v17
    %v83 = vunpack.c.l.b16 %v18
    %v84 = vunpack.c.h.b16 %v18
    %v85 = vunpack.c.l.b16 %v19
    %v86 = vunpack.c.h.b16 %v19
    %v87 = vunpack.c.l.b16 %v20
    %v88 = vunpack.c.h.b16 %v20
    %v89 = vunpack.c.l.b16 %v21
    %v90 = vunpack.c.h.b16 %v21
    %v91 = vunpack.c.l.b16 %v22
    %v92 = vunpack.c.h.b16 %v22
    %v93 = vunpack.c.l.b16 %v23
    %v94 = vunpack.c.h.b16 %v23
    %v95 = vunpack.c.l.b16 %v24
    %v96 = vunpack.c.h.b16 %v24
    %v97 = vunpack.c.l.b16 %v25
    %v98 = vunpack.c.h.b16 %v25
    %v99 = vunpack.c.l.b16 %v26
    %v100 = vunpack.c.h.b16 %v26
    %v101 = vunpack.c.l.b16 %v27
    %v102 = vunpack.c.h.b16 %v27
    %v103 = vunpack.c.l.b16 %v28
    %v104 = vunpack.c.h.b16 %v28
    %v105 = vunpack.c.l.b16 %v29
    %v106 = vunpack.c.h.b16 %v29
    %v107 = vunpack.c.l.b16 %v30
    %v108 = vunpack.c.h.b16 %v30
    %v109 = vunpack.c.l.b16 %v31
    %v110 = vunpack.c.h.b16 %v31
    %v111 = vunpack.c.l.b16 %v32
    %v112 = vunpack.c.h.b16 %v32
    %v113 = vpack.c.b16 %v83, %v81
    %v114 = vpack.c.b16 %v84, %v82
    %v115 = vpack.c.b16 %v87, %v85
    %v116 = vpack.c.b16 %v88, %v86
    %v117 = vpack.c.b16 %v91, %v89
    %v118 = vpack.c.b16 %v92, %v90
    %v119 = vpack.c.b16 %v95, %v93
    %v120 = vpack.c.b16 %v96, %v94
    %v121 = vpack.c.b16 %v99, %v97
    %v122 = vpack.c.b16 %v100, %v98
    %v123 = vpack.c.b16 %v103, %v101
    %v124 = vpack.c.b16 %v104, %v102
    %v125 = vpack.c.b16 %v107, %v105
    %v126 = vpack.c.b16 %v108, %v106
    %v127 = vpack.c.b16 %v111, %v109
    %v128 = vpack.c.b16 %v112, %v110
    %v177 = vunpack.c.l.b16 %v33
    %v178 = vunpack.c.l.b16 %v34
    %v179 = vunpack.c.l.b16 %v35
    %v180 = vunpack.c.l.b16 %v36
    %v181 = vunpack.c.l.b16 %v37
    %v182 = vunpack.c.l.b16 %v38
    %v183 = vunpack.c.l.b16 %v39
    %v184 = vunpack.c.l.b16 %v40
    %v185 = vunpack.c.l.b16 %v41
    %v186 = vunpack.c.l.b16 %v42
    %v187 = vunpack.c.l.b16 %v43
    %v188 = vunpack.c.l.b16 %v44
    %v189 = vunpack.c.l.b16 %v45
    %v190 = vunpack.c.l.b16 %v46
    %v191 = vunpack.c.l.b16 %v47
    %v192 = vunpack.c.l.b16 %v48
    %v193 = vunpack.c.l.b16 %v49
    %v194 = vunpack.c.l.b16 %v50
    %v195 = vunpack.c.l.b16 %v51
    %v196 = vunpack.c.l.b16 %v52
    %v197 = vunpack.c.l.b16 %v53
    %v198 = vunpack.c.l.b16 %v54
    %v199 = vunpack.c.l.b16 %v55
    %v200 = vunpack.c.l.b16 %v56
    %v201 = vunpack.c.l.b16 %v57
    %v202 = vunpack.c.l.b16 %v58
    %v203 = vunpack.c.l.b16 %v59
    %v204 = vunpack.c.l.b16 %v60
    %v205 = vunpack.c.l.b16 %v61
    %v206 = vunpack.c.l.b16 %v62
    %v207 = vunpack.c.l.b16 %v63
    %v208 = vunpack.c.l.b16 %v64
    %v209 = vpack.c.b16 %v178, %v177
    %v210 = vpack.c.b16 %v180, %v179
    %v211 = vpack.c.b16 %v182, %v181
    %v212 = vpack.c.b16 %v184, %v183
    %v213 = vpack.c.b16 %v186, %v185
    %v214 = vpack.c.b16 %v188, %v187
    %v215 = vpack.c.b16 %v190, %v189
    %v216 = vpack.c.b16 %v192, %v191
    %v217 = vpack.c.b16 %v194, %v193
    %v218 = vpack.c.b16 %v196, %v195
    %v219 = vpack.c.b16 %v198, %v197
    %v220 = vpack.c.b16 %v200, %v199
    %v221 = vpack.c.b16 %v202, %v201
    %v222 = vpack.c.b16 %v204, %v203
    %v223 = vpack.c.b16 %v206, %v205
    %v224 = vpack.c.b16 %v208, %v207
    %241 = vmatprep.subr.bf16.mxu0 0
    %242 = vmatpush1.bf16.msra.mxu0 %v209
    %243 = vmatprep.subr.bf16.mxu0 0
    %244 = vmatpush1.bf16.msra.mxu0 %v210
    %245 = vmatprep.subr.bf16.mxu0 0
    %246 = vmatpush1.bf16.msra.mxu0 %v211
    %247 = vmatprep.subr.bf16.mxu0 0
    %248 = vmatpush1.bf16.msra.mxu0 %v212
    %249 = vmatprep.subr.bf16.mxu0 0
    %250 = vmatpush1.bf16.msra.mxu0 %v213
    %251 = vmatprep.subr.bf16.mxu0 0
    %252 = vmatpush1.bf16.msra.mxu0 %v214
    %253 = vmatprep.subr.bf16.mxu0 0
    %254 = vmatpush1.bf16.msra.mxu0 %v215
    %255 = vmatprep.subr.bf16.mxu0 0
    %256 = vmatpush1.bf16.msra.mxu0 %v216
    %257 = vmatprep.subr.bf16.mxu0 0
    %258 = vmatpush1.bf16.msra.mxu0 %v217
    %259 = vmatprep.subr.bf16.mxu0 0
    %260 = vmatpush1.bf16.msra.mxu0 %v218
    %261 = vmatprep.subr.bf16.mxu0 0
    %262 = vmatpush1.bf16.msra.mxu0 %v219
    %263 = vmatprep.subr.bf16.mxu0 0
    %264 = vmatpush1.bf16.msra.mxu0 %v220
    %265 = vmatprep.subr.bf16.mxu0 0
    %266 = vmatpush1.bf16.msra.mxu0 %v221
    %267 = vmatprep.subr.bf16.mxu0 0
    %268 = vmatpush1.bf16.msra.mxu0 %v222
    %269 = vmatprep.subr.bf16.mxu0 0
    %270 = vmatpush1.bf16.msra.mxu0 %v223
    %271 = vmatprep.subr.bf16.mxu0 0
    %272 = vmatpush1.bf16.msra.mxu0 %v224
    %273 = vmatprep.mubr.bf16.mxu0 %v114
    %274 = vmatmul.mubr.bf16.gmra.mrb[0].mxu0 %v113
    %v275 = vpop.f32.mrb[0].mxu0
    %v276 = vadd.f32 0.0, %v275
    %v277 = vpop.f32.mrb[0].mxu0
    %v278 = vpop.f32.mrb[0].mxu0
    %v279 = vadd.f32 0.0, %v278
    %v280 = vpop.f32.mrb[0].mxu0
    %281 = vmatprep.mubr.bf16.mxu0 %v116
    %282 = vmatmul.mubr.bf16.gmra.mrb[0].mxu0 %v115
    %v283 = vpop.f32.mrb[0].mxu0
    %v284 = vadd.f32 0.0, %v283
    %v285 = vpop.f32.mrb[0].mxu0
    %v286 = vpop.f32.mrb[0].mxu0
    %v287 = vadd.f32 0.0, %v286
    %v288 = vpop.f32.mrb[0].mxu0
    %289 = vmatprep.mubr.bf16.mxu0 %v118
    %290 = vmatmul.mubr.bf16.gmra.mrb[0].mxu0 %v117
    %v291 = vpop.f32.mrb[0].mxu0
    %v292 = vadd.f32 0.0, %v291
    %v293 = vpop.f32.mrb[0].mxu0
    %v294 = vpop.f32.mrb[0].mxu0
    %v295 = vadd.f32 0.0, %v294
    %v296 = vpop.f32.mrb[0].mxu0
    %297 = vmatprep.mubr.bf16.mxu0 %v120
    %298 = vmatmul.mubr.bf16.gmra.mrb[0].mxu0 %v119
    %v299 = vpop.f32.mrb[0].mxu0
    %v300 = vadd.f32 0.0, %v299
    %v301 = vpop.f32.mrb[0].mxu0
    %v302 = vpop.f32.mrb[0].mxu0
    %v303 = vadd.f32 0.0, %v302
    %v304 = vpop.f32.mrb[0].mxu0
    %305 = vmatprep.mubr.bf16.mxu0 %v122
    %306 = vmatmul.mubr.bf16.gmra.mrb[0].mxu0 %v121
    %v307 = vpop.f32.mrb[0].mxu0
    %v308 = vadd.f32 0.0, %v307
    %v309 = vpop.f32.mrb[0].mxu0
    %v310 = vpop.f32.mrb[0].mxu0
    %v311 = vadd.f32 0.0, %v310
    %v312 = vpop.f32.mrb[0].mxu0
    %313 = vmatprep.mubr.bf16.mxu0 %v124
    %314 = vmatmul.mubr.bf16.gmra.mrb[0].mxu0 %v123
    %v315 = vpop.f32.mrb[0].mxu0
    %v316 = vadd.f32 0.0, %v315
    %v317 = vpop.f32.mrb[0].mxu0
    %v318 = vpop.f32.mrb[0].mxu0
    %v319 = vadd.f32 0.0, %v318
    %v320 = vpop.f32.mrb[0].mxu0
    %321 = vmatprep.mubr.bf16.mxu0 %v126
    %322 = vmatmul.mubr.bf16.gmra.mrb[0].mxu0 %v125
    %v323 = vpop.f32.mrb[0].mxu0
    %v324 = vadd.f32 0.0, %v323
    %v325 = vpop.f32.mrb[0].mxu0
    %v326 = vpop.f32.mrb[0].mxu0
    %v327 = vadd.f32 0.0, %v326
    %v328 = vpop.f32.mrb[0].mxu0
    %329 = vmatprep.mubr.bf16.mxu0 %v128
    %330 = vmatmul.mubr.bf16.gmra.mrb[0].mxu0 %v127
    %v331 = vpop.f32.mrb[0].mxu0
    %v332 = vadd.f32 0.0, %v331
    %v333 = vpop.f32.mrb[0].mxu0
    %v334 = vpop.f32.mrb[0].mxu0
    %v335 = vadd.f32 0.0, %v334
    %v336 = vpop.f32.mrb[0].mxu0
    %337 = vdwg.mxu0
    %v338 = vpack.c.bf16 %v279, %v276
    %v339 = vpack.c.bf16 %v287, %v284
    %v340 = vpack.c.bf16 %v295, %v292
    %v341 = vpack.c.bf16 %v303, %v300
    %v342 = vpack.c.bf16 %v311, %v308
    %v343 = vpack.c.bf16 %v319, %v316
    %v344 = vpack.c.bf16 %v327, %v324
    %v345 = vpack.c.bf16 %v335, %v332
    %v354 = vunpack.c.l.b16 %v338
    %v355 = vunpack.c.h.b16 %v338
    %v356 = vunpack.c.l.b16 %v339
    %v357 = vunpack.c.h.b16 %v339
    %v358 = vunpack.c.l.b16 %v340
    %v359 = vunpack.c.h.b16 %v340
    %v360 = vunpack.c.l.b16 %v341
    %v361 = vunpack.c.h.b16 %v341
    %v362 = vunpack.c.l.b16 %v342
    %v363 = vunpack.c.h.b16 %v342
    %v364 = vunpack.c.l.b16 %v343
    %v365 = vunpack.c.h.b16 %v343
    %v366 = vunpack.c.l.b16 %v344
    %v367 = vunpack.c.h.b16 %v344
    %v368 = vunpack.c.l.b16 %v345
    %v369 = vunpack.c.h.b16 %v345
    %v370 = vpack.c.b16 %v354, %v354
    %v371 = vpack.c.b16 %v355, %v355
    %v372 = vpack.c.b16 %v356, %v356
    %v373 = vpack.c.b16 %v357, %v357
    %v374 = vpack.c.b16 %v358, %v358
    %v375 = vpack.c.b16 %v359, %v359
    %v376 = vpack.c.b16 %v360, %v360
    %v377 = vpack.c.b16 %v361, %v361
    %v378 = vpack.c.b16 %v362, %v362
    %v379 = vpack.c.b16 %v363, %v363
    %v380 = vpack.c.b16 %v364, %v364
    %v381 = vpack.c.b16 %v365, %v365
    %v382 = vpack.c.b16 %v366, %v366
    %v383 = vpack.c.b16 %v367, %v367
    %v384 = vpack.c.b16 %v368, %v368
    %v385 = vpack.c.b16 %v369, %v369
    %vm402 = vcmask 519168
    %403 = vst.msk [vmem:[%s2] sm:$0xf] %vm402, %v370
    %404 = vst.msk [vmem:[%s2 + $0x4] sm:$0xf] %vm402, %v371
    %405 = vst.msk [vmem:[%s2 + $0x8] sm:$0xf] %vm402, %v372
    %406 = vst.msk [vmem:[%s2 + $0xc] sm:$0xf] %vm402, %v373
    %407 = vst.msk [vmem:[%s2 + $0x10] sm:$0xf] %vm402, %v374
    %408 = vst.msk [vmem:[%s2 + $0x14] sm:$0xf] %vm402, %v375
    %409 = vst.msk [vmem:[%s2 + $0x18] sm:$0xf] %vm402, %v376
    %410 = vst.msk [vmem:[%s2 + $0x1c] sm:$0xf] %vm402, %v377
    %411 = vst.msk [vmem:[%s2 + $0x20] sm:$0xf] %vm402, %v378
    %412 = vst.msk [vmem:[%s2 + $0x24] sm:$0xf] %vm402, %v379
    %413 = vst.msk [vmem:[%s2 + $0x28] sm:$0xf] %vm402, %v380
    %414 = vst.msk [vmem:[%s2 + $0x2c] sm:$0xf] %vm402, %v381
    %415 = vst.msk [vmem:[%s2 + $0x30] sm:$0xf] %vm402, %v382
    %416 = vst.msk [vmem:[%s2 + $0x34] sm:$0xf] %vm402, %v383
    %417 = vst.msk [vmem:[%s2 + $0x38] sm:$0xf] %vm402, %v384
    %418 = vst.msk [vmem:[%s2 + $0x3c] sm:$0xf] %vm402, %v385
    %vm419 = vcmask 523264
    %v420 = vsel %vm419, %v276, 0.0
    %v421 = vsel %vm419, %v279, 0.0
    %v422 = vadd.f32 %v420, %v421
    %v423 = vsel %vm419, %v284, 0.0
    %v424 = vadd.f32 %v422, %v423
    %v425 = vsel %vm419, %v287, 0.0
    %v426 = vadd.f32 %v424, %v425
    %v427 = vsel %vm419, %v292, 0.0
    %v428 = vadd.f32 %v426, %v427
    %v429 = vsel %vm419, %v295, 0.0
    %v430 = vadd.f32 %v428, %v429
    %v431 = vsel %vm419, %v300, 0.0
    %v432 = vadd.f32 %v430, %v431
    %v433 = vsel %vm419, %v303, 0.0
    %v434 = vadd.f32 %v432, %v433
    %v435 = vsel %vm419, %v308, 0.0
    %v436 = vadd.f32 %v434, %v435
    %v437 = vsel %vm419, %v311, 0.0
    %v438 = vadd.f32 %v436, %v437
    %v439 = vsel %vm419, %v316, 0.0
    %v440 = vadd.f32 %v438, %v439
    %v441 = vsel %vm419, %v319, 0.0
    %v442 = vadd.f32 %v440, %v441
    %v443 = vsel %vm419, %v324, 0.0
    %v444 = vadd.f32 %v442, %v443
    %v445 = vsel %vm419, %v327, 0.0
    %v446 = vadd.f32 %v444, %v445
    %v447 = vsel %vm419, %v332, 0.0
    %v448 = vadd.f32 %v446, %v447
    %v449 = vsel %vm419, %v335, 0.0
    %v450 = vadd.f32 %v448, %v449
    %v451 = vrot.slane %v450, 4
    %v452 = vadd.f32 %v450, %v451
    %v453 = vrot.slane %v452, 2
    %v454 = vadd.f32 %v452, %v453
    %v455 = vrot.slane %v454, 1
    %v456 = vadd.f32 %v454, %v455
    %v457 = vmul.f32 %v276, %v276
    %v458 = vmul.f32 %v279, %v279
    %v459 = vmul.f32 %v284, %v284
    %v460 = vmul.f32 %v287, %v287
    %v461 = vmul.f32 %v292, %v292
    %v462 = vmul.f32 %v295, %v295
    %v463 = vmul.f32 %v300, %v300
    %v464 = vmul.f32 %v303, %v303
    %v465 = vmul.f32 %v308, %v308
    %v466 = vmul.f32 %v311, %v311
    %v467 = vmul.f32 %v316, %v316
    %v468 = vmul.f32 %v319, %v319
    %v469 = vmul.f32 %v324, %v324
    %v470 = vmul.f32 %v327, %v327
    %v471 = vmul.f32 %v332, %v332
    %v472 = vmul.f32 %v335, %v335
    %v473 = vsel %vm419, %v457, 0.0
    %v474 = vsel %vm419, %v458, 0.0
    %v475 = vadd.f32 %v473, %v474
    %v476 = vsel %vm419, %v459, 0.0
    %v477 = vadd.f32 %v475, %v476
    %v478 = vsel %vm419, %v460, 0.0
    %v479 = vadd.f32 %v477, %v478
    %v480 = vsel %vm419, %v461, 0.0
    %v481 = vadd.f32 %v479, %v480
    %v482 = vsel %vm419, %v462, 0.0
    %v483 = vadd.f32 %v481, %v482
    %v484 = vsel %vm419, %v463, 0.0
    %v485 = vadd.f32 %v483, %v484
    %v486 = vsel %vm419, %v464, 0.0
    %v487 = vadd.f32 %v485, %v486
    %v488 = vsel %vm419, %v465, 0.0
    %v489 = vadd.f32 %v487, %v488
    %v490 = vsel %vm419, %v466, 0.0
    %v491 = vadd.f32 %v489, %v490
    %v492 = vsel %vm419, %v467, 0.0
    %v493 = vadd.f32 %v491, %v492
    %v494 = vsel %vm419, %v468, 0.0
    %v495 = vadd.f32 %v493, %v494
    %v496 = vsel %vm419, %v469, 0.0
    %v497 = vadd.f32 %v495, %v496
    %v498 = vsel %vm419, %v470, 0.0
    %v499 = vadd.f32 %v497, %v498
    %v500 = vsel %vm419, %v471, 0.0
    %v501 = vadd.f32 %v499, %v500
    %v502 = vsel %vm419, %v472, 0.0
    %v503 = vadd.f32 %v501, %v502
    %v504 = vrot.slane %v503, 4
    %v505 = vadd.f32 %v503, %v504
    %v506 = vrot.slane %v505, 2
    %v507 = vadd.f32 %v505, %v506
    %v508 = vrot.slane %v507, 1
    %v509 = vadd.f32 %v507, %v508
    %vm510 = vcmask 516096
    %511 = vst.msk [vmem:[#allocation2] sm:$0x1] %vm510, %v456
    %512 = vst.msk [vmem:[#allocation4] sm:$0x1] %vm510, %v509
    // Predicated region
    $region10: #{tpu_custom_call.1} parent=1 // pred_check
      _
    $region11: #{tpu_custom_call.1} parent=1 // pred_check_branch
      %514 = sbr.rel (0) target = $region13
    $region12: #{tpu_custom_call.1} parent=1 // pred_region
      _
    $region13: #{tpu_custom_call.1} parent=1 // pred_fallthru
      _
    // Predicated region
    $region14: #{tpu_custom_call.1} parent=1 // pred_check
      _
    $region15: #{tpu_custom_call.1} parent=1 // pred_check_branch
      %516 = sbr.rel (0) target = $region17
    $region16: #{tpu_custom_call.1} parent=1 // pred_region
      %s518 = ssub.s32 16, 16
      %519 = vsyncadd [#allocation3], %s518
      %s521 = sshll.u32 [#allocation2], 4
      %s522 = int_to_ptr.vmem [resolvable:$true] %s521
      %524 = dma.vmem_to_hbm [thread:$0]  %s522, 16, %s3, [#allocation3]
    $region17: #{tpu_custom_call.1} parent=1 // pred_fallthru
      _
    // Predicated region
    $region18: #{tpu_custom_call.1} parent=1 // pred_check
      _
    $region19: #{tpu_custom_call.1} parent=1 // pred_check_branch
      %526 = sbr.rel (0) target = $region21
    $region20: #{tpu_custom_call.1} parent=1 // pred_region
      %s528 = ssub.s32 16, 16
      %529 = vsyncadd [#allocation5], %s528
      %s531 = sshll.u32 [#allocation4], 4
      %s532 = int_to_ptr.vmem [resolvable:$true] %s531
      %534 = dma.vmem_to_hbm [thread:$0]  %s532, 16, %s4, [#allocation5]
    $region21: #{tpu_custom_call.1} parent=1 // pred_fallthru
      _
    // Predicated region
    $region22: #{tpu_custom_call.1} parent=1 // pred_check
      _
    $region23: #{tpu_custom_call.1} parent=1 // pred_check_branch
      %536 = sbr.rel (0) target = $region25
    $region24: #{tpu_custom_call.1} parent=1 // pred_region
      _
    $region25: #{tpu_custom_call.1} parent=1 // pred_fallthru
      _
    // Predicated region
    $region26: #{tpu_custom_call.1} parent=1 // pred_check
      _
    $region27: #{tpu_custom_call.1} parent=1 // pred_check_branch
      %538 = sbr.rel (0) target = $region29
    $region28: #{tpu_custom_call.1} parent=1 // pred_region
      %539 = dma.done [#allocation3], 16
    $region29: #{tpu_custom_call.1} parent=1 // pred_fallthru
      _
    // Predicated region
    $region30: #{tpu_custom_call.1} parent=1 // pred_check
      _
    $region31: #{tpu_custom_call.1} parent=1 // pred_check_branch
      %541 = sbr.rel (0) target = $region33
    $region32: #{tpu_custom_call.1} parent=1 // pred_region
      %542 = dma.done [#allocation5], 16
    $region33: #{tpu_custom_call.1} parent=1 // pred_fallthru
      _
    %543 = vsyncpa [#allocation3], 1
    %544 = vsyncpa [#allocation5], 1

</llo_original>
